<compile_context>
chip_gen: v6e
topology: v6e:2x2x1
jax: 0.10.0
libtpu: 0.0.40
codegen_flags: <defaults>
</compile_context>

<pallas_src>
import math

import jax
import jax.numpy as jnp
from jax.experimental import pallas as pl
from jax.experimental.pallas import tpu as pltpu

# ---- model hyper-parameters (match the PyTorch module) ----
D_K = 64
D_V = 64
N_HEADS = 2          # module default is 8; small value for the demo
EMBED_DIM = 32
BATCH = 2
SEQ = 8
LN_EPS = 1e-5


def _mha_kernel(xq_ref, xk_ref, xv_ref, bias_ref,
                wq_ref, wk_ref, wv_ref, wfc_ref,
                out_ref, attn_ref):
    B, L, _ = bias_ref.shape             # bias: [B, L, L]
    H = attn_ref.shape[0]                # attn: [H, B, L, L]
    d_k = wq_ref.shape[1] // H
    d_v = wv_ref.shape[1] // H

    xq = xq_ref[...]                                                      # [B*L, D]

    # Q/K/V projections: three full-batch MXU matmuls.
    # (the 1/sqrt(d_k) softmax scale is already folded into W_Q by the wrapper)
    q = jnp.dot(xq, wq_ref[...], preferred_element_type=jnp.float32)      # [B*L, H*dk]
    k = jnp.dot(xk_ref[...], wk_ref[...], preferred_element_type=jnp.float32)
    v = jnp.dot(xv_ref[...], wv_ref[...], preferred_element_type=jnp.float32)

    # Split the batch back out (pure major-dim split; lane dim untouched).
    q = q.reshape(B, L, H * d_k)
    k = k.reshape(B, L, H * d_k)
    v = v.reshape(B, L, H * d_v)
    bias = bias_ref[...]                  # additive mask: 0 = keep, -1e9 = masked

    # Accumulate (residual + output projection) directly in registers; the
    # accumulator is seeded with the residual so no separate add is needed.
    y = xq                                                                # [B*L, D]
    for h in range(H):                    # static, small head count
        q_h = q[:, :, h * d_k:(h + 1) * d_k]                              # [B, L, dk]
        k_h = k[:, :, h * d_k:(h + 1) * d_k]                              # [B, L, dk]
        v_h = v[:, :, h * d_v:(h + 1) * d_v]                              # [B, L, dv]

        # Scores: contract last dims -> no explicit K transpose.
        s = jnp.einsum('bqd,bkd->bqk', q_h, k_h,
                       preferred_element_type=jnp.float32) + bias         # [B, L, L]

        # Numerically-stable softmax; divide done as EUP reciprocal multiply.
        m = jnp.max(s, axis=-1, keepdims=True)
        e = jnp.exp(s - m)
        p = e * pl.reciprocal(jnp.sum(e, axis=-1, keepdims=True), approx=True)

        attn_ref[h] = p                                                   # [B, L, L]

        ctx_h = jnp.einsum('bqk,bkd->bqd', p, v_h,
                           preferred_element_type=jnp.float32)            # [B, L, dv]
        # Per-head slice of the output projection, accumulated in registers.
        y = y + jnp.dot(ctx_h.reshape(B * L, d_v),
                        wfc_ref[h * d_v:(h + 1) * d_v, :],
                        preferred_element_type=jnp.float32)               # [B*L, D]

    # LayerNorm (fresh nn.LayerNorm => gamma=1, beta=0, eps=1e-5).
    mean = jnp.mean(y, axis=-1, keepdims=True)
    var = jnp.mean((y - mean) ** 2, axis=-1, keepdims=True)
    out_ref[...] = (y - mean) * jax.lax.rsqrt(var + LN_EPS)


def multi_head_attention(input_q, input_k, input_v, attn_mask,
                         w_q, w_k, w_v, w_fc):
    """input_{q,k,v}: [B, L, D] f32; attn_mask: [B, L, L] bool (True = masked).
       Returns (output [B, L, D], attn [B, H, L, L])."""
    B, L, D = input_q.shape
    H = N_HEADS

    # Fold the 1/sqrt(d_k) scale into W_Q (zero in-kernel cost).
    w_q_scaled = (w_q * (1.0 / math.sqrt(D_K))).astype(jnp.float32)
    # Precompute the additive mask bias (drops a compare+select per head in-kernel).
    bias = jnp.where(attn_mask, -1e9, 0.0).astype(jnp.float32)
    # Fold batch into the sublane axis -> one kernel invocation, no grid.
    xq2 = input_q.reshape(B * L, D)
    xk2 = input_k.reshape(B * L, D)
    xv2 = input_v.reshape(B * L, D)

    def vmem():
        return pl.BlockSpec(memory_space=pltpu.MemorySpace.VMEM)

    out2, attn_hb = pl.pallas_call(
        _mha_kernel,
        out_shape=(
            jax.ShapeDtypeStruct((B * L, D), jnp.float32),
            jax.ShapeDtypeStruct((H, B, L, L), jnp.float32),
        ),
        in_specs=[vmem() for _ in range(8)],
        out_specs=(vmem(), vmem()),
    )(xq2, xk2, xv2, bias, w_q_scaled, w_k, w_v, w_fc)

    out = out2.reshape(B, L, D)
    attn = jnp.transpose(attn_hb, (1, 0, 2, 3))     # [H, B, L, L] -> [B, H, L, L]
    return out, attn


def _reference(input_q, input_k, input_v, attn_mask, w_q, w_k, w_v, w_fc):
    """Pure-JAX reference matching the PyTorch forward."""
    B, L, D = input_q.shape
    H = N_HEADS

    def split_heads(x, d):
        return x.reshape(B, L, H, d).transpose(0, 2, 1, 3)  # [B, H, L, d]

    Q = split_heads(input_q @ w_q, D_K)
    K = split_heads(input_k @ w_k, D_K)
    V = split_heads(input_v @ w_v, D_V)

    scores = jnp.einsum("bhqd,bhkd->bhqk", Q, K) / math.sqrt(D_K)
    scores = jnp.where(attn_mask[:, None, :, :], -1e9, scores)
    attn = jax.nn.softmax(scores, axis=-1)
    ctx = jnp.einsum("bhqk,bhkd->bhqd", attn, V)
    ctx = ctx.transpose(0, 2, 1, 3).reshape(B, L, H * D_V)
    out = ctx @ w_fc + input_q
    mean = out.mean(-1, keepdims=True)
    var = ((out - mean) ** 2).mean(-1, keepdims=True)
    out = (out - mean) / jnp.sqrt(var + LN_EPS)
    return out, attn


if __name__ == "__main__":
    key = jax.random.PRNGKey(0)
    ks = jax.random.split(key, 8)

    input_q = jax.random.normal(ks[0], (BATCH, SEQ, EMBED_DIM), jnp.float32)
    input_k = jax.random.normal(ks[1], (BATCH, SEQ, EMBED_DIM), jnp.float32)
    input_v = jax.random.normal(ks[2], (BATCH, SEQ, EMBED_DIM), jnp.float32)
    # Random mask (True = masked-out). Keep the diagonal unmasked so no row is
    # fully masked (matches real causal/padding masks; -1e9 masking is otherwise
    # ill-defined for fully-masked rows).
    attn_mask = jax.random.bernoulli(ks[3], 0.3, (BATCH, SEQ, SEQ))
    attn_mask = jnp.logical_and(attn_mask, ~jnp.eye(SEQ, dtype=bool)[None])

    # Deterministic weight init (torch Linear weights are (out,in); we store (in,out)).
    s = 1.0 / math.sqrt(EMBED_DIM)
    w_q = jax.random.uniform(ks[4], (EMBED_DIM, N_HEADS * D_K), jnp.float32, -s, s)
    w_k = jax.random.uniform(ks[5], (EMBED_DIM, N_HEADS * D_K), jnp.float32, -s, s)
    w_v = jax.random.uniform(ks[6], (EMBED_DIM, N_HEADS * D_V), jnp.float32, -s, s)
    s2 = 1.0 / math.sqrt(N_HEADS * D_V)
    w_fc = jax.random.uniform(ks[7], (N_HEADS * D_V, EMBED_DIM), jnp.float32, -s2, s2)

    out, attn = multi_head_attention(input_q, input_k, input_v, attn_mask,
                                     w_q, w_k, w_v, w_fc)
    jax.block_until_ready((out, attn))

    ref_out, ref_attn = _reference(input_q, input_k, input_v, attn_mask,
                                   w_q, w_k, w_v, w_fc)
    # Tolerances account for the approximate EUP reciprocal in the softmax.
    assert jnp.allclose(out, ref_out, atol=2e-3, rtol=2e-3)
    assert jnp.allclose(attn, ref_attn, atol=2e-3, rtol=2e-3)

    print("KERNEL_OK")
</pallas_src>

<mosaic_0001>
module attributes {stable_mosaic.version = 11 : i64} {
  func.func @_mha_kernel(%arg0: memref<16x32xf32, #tpu.memory_space<vmem>>, %arg1: memref<16x32xf32, #tpu.memory_space<vmem>>, %arg2: memref<16x32xf32, #tpu.memory_space<vmem>>, %arg3: memref<2x8x8xf32, #tpu.memory_space<vmem>>, %arg4: memref<32x128xf32, #tpu.memory_space<vmem>>, %arg5: memref<32x128xf32, #tpu.memory_space<vmem>>, %arg6: memref<32x128xf32, #tpu.memory_space<vmem>>, %arg7: memref<128x32xf32, #tpu.memory_space<vmem>>, %arg8: memref<16x32xf32, #tpu.memory_space<vmem>>, %arg9: memref<2x2x8x8xf32, #tpu.memory_space<vmem>>) attributes {dimension_semantics = [], scalar_prefetch = 0 : i64, scratch_operands = 0 : i64, tpu.core_type = #tpu.core_type<tc>} {
    %c0 = arith.constant 0 : index
    %c0_0 = arith.constant 0 : index
    %0 = vector.load %arg0[%c0, %c0_0] : memref<16x32xf32, #tpu.memory_space<vmem>>, vector<16x32xf32>
    %c0_1 = arith.constant 0 : index
    %c0_2 = arith.constant 0 : index
    %1 = vector.load %arg4[%c0_1, %c0_2] : memref<32x128xf32, #tpu.memory_space<vmem>>, vector<32x128xf32>
    %cst = arith.constant dense<0.000000e+00> : vector<16x128xf32>
    %2 = tpu.matmul %0, %1, %cst {dimension_numbers = #tpu.dot_dimension_numbers<[1], [0], [0], [1], [0, 0, 1, 1], [], []>} : vector<16x32xf32>, vector<32x128xf32>, vector<16x128xf32> -> vector<16x128xf32>
    %c0_3 = arith.constant 0 : index
    %c0_4 = arith.constant 0 : index
    %3 = vector.load %arg1[%c0_3, %c0_4] : memref<16x32xf32, #tpu.memory_space<vmem>>, vector<16x32xf32>
    %c0_5 = arith.constant 0 : index
    %c0_6 = arith.constant 0 : index
    %4 = vector.load %arg5[%c0_5, %c0_6] : memref<32x128xf32, #tpu.memory_space<vmem>>, vector<32x128xf32>
    %cst_7 = arith.constant dense<0.000000e+00> : vector<16x128xf32>
    %5 = tpu.matmul %3, %4, %cst_7 {dimension_numbers = #tpu.dot_dimension_numbers<[1], [0], [0], [1], [0, 0, 1, 1], [], []>} : vector<16x32xf32>, vector<32x128xf32>, vector<16x128xf32> -> vector<16x128xf32>
    %c0_8 = arith.constant 0 : index
    %c0_9 = arith.constant 0 : index
    %6 = vector.load %arg2[%c0_8, %c0_9] : memref<16x32xf32, #tpu.memory_space<vmem>>, vector<16x32xf32>
    %c0_10 = arith.constant 0 : index
    %c0_11 = arith.constant 0 : index
    %7 = vector.load %arg6[%c0_10, %c0_11] : memref<32x128xf32, #tpu.memory_space<vmem>>, vector<32x128xf32>
    %cst_12 = arith.constant dense<0.000000e+00> : vector<16x128xf32>
    %8 = tpu.matmul %6, %7, %cst_12 {dimension_numbers = #tpu.dot_dimension_numbers<[1], [0], [0], [1], [0, 0, 1, 1], [], []>} : vector<16x32xf32>, vector<32x128xf32>, vector<16x128xf32> -> vector<16x128xf32>
    %9 = vector.shape_cast %2 : vector<16x128xf32> to vector<2x8x128xf32>
    %10 = vector.shape_cast %5 : vector<16x128xf32> to vector<2x8x128xf32>
    %11 = vector.shape_cast %8 : vector<16x128xf32> to vector<2x8x128xf32>
    %c0_13 = arith.constant 0 : index
    %c0_14 = arith.constant 0 : index
    %c0_15 = arith.constant 0 : index
    %12 = vector.load %arg3[%c0_13, %c0_14, %c0_15] : memref<2x8x8xf32, #tpu.memory_space<vmem>>, vector<2x8x8xf32>
    %13 = vector.extract_strided_slice %9 {offsets = [0, 0, 0], sizes = [2, 8, 64], strides = [1, 1, 1]} : vector<2x8x128xf32> to vector<2x8x64xf32>
    %14 = vector.extract_strided_slice %10 {offsets = [0, 0, 0], sizes = [2, 8, 64], strides = [1, 1, 1]} : vector<2x8x128xf32> to vector<2x8x64xf32>
    %15 = vector.extract_strided_slice %11 {offsets = [0, 0, 0], sizes = [2, 8, 64], strides = [1, 1, 1]} : vector<2x8x128xf32> to vector<2x8x64xf32>
    "tpu.trace_start"() <{level = 10 : i32, message = "bqd,bkd->bqk"}> : () -> ()
    %cst_16 = arith.constant dense<0.000000e+00> : vector<2x8x8xf32>
    %16 = tpu.matmul %13, %14, %cst_16 {dimension_numbers = #tpu.dot_dimension_numbers<[2], [2], [1], [1], [0, 0, 0, 1, 1, 1], [0], [0]>} : vector<2x8x64xf32>, vector<2x8x64xf32>, vector<2x8x8xf32> -> vector<2x8x8xf32>
    "tpu.trace_stop"() : () -> ()
    %17 = arith.addf %16, %12 : vector<2x8x8xf32>
    %cst_17 = arith.constant dense<0xFF800000> : vector<2x8xf32>
    %18 = vector.multi_reduction <maximumf>, %17, %cst_17 [2] : vector<2x8x8xf32> to vector<2x8xf32>
    %19 = vector.shape_cast %18 : vector<2x8xf32> to vector<2x8x1xf32>
    %20 = vector.broadcast %19 : vector<2x8x1xf32> to vector<2x8x8xf32>
    %21 = arith.subf %17, %20 : vector<2x8x8xf32>
    %22 = math.exp %21 : vector<2x8x8xf32>
    %cst_18 = arith.constant dense<0.000000e+00> : vector<2x8xf32>
    %23 = vector.multi_reduction <add>, %22, %cst_18 [2] : vector<2x8x8xf32> to vector<2x8xf32>
    %24 = vector.shape_cast %23 : vector<2x8xf32> to vector<2x8x1xf32>
    %25 = tpu.reciprocal %24 {approx = true} : vector<2x8x1xf32> -> vector<2x8x1xf32>
    %26 = vector.broadcast %25 : vector<2x8x1xf32> to vector<2x8x8xf32>
    %27 = arith.mulf %22, %26 : vector<2x8x8xf32>
    %c0_19 = arith.constant 0 : index
    %c0_20 = arith.constant 0 : index
    %c0_21 = arith.constant 0 : index
    %c0_22 = arith.constant 0 : index
    %28 = vector.load %arg9[%c0_19, %c0_20, %c0_21, %c0_22] : memref<2x2x8x8xf32, #tpu.memory_space<vmem>>, vector<1x2x8x8xf32>
    %29 = vector.shape_cast %28 : vector<1x2x8x8xf32> to vector<2x8x8xf32>
    %30 = vector.shape_cast %27 : vector<2x8x8xf32> to vector<1x2x8x8xf32>
    tpu.vector_store %arg9[%c0_19, %c0_20, %c0_21, %c0_22], %30 {strides = array<i32>} : memref<2x2x8x8xf32, #tpu.memory_space<vmem>>, vector<1x2x8x8xf32>,
    "tpu.trace_start"() <{level = 10 : i32, message = "bqk,bkd->bqd"}> : () -> ()
    %cst_23 = arith.constant dense<0.000000e+00> : vector<2x8x64xf32>
    %31 = tpu.matmul %27, %15, %cst_23 {dimension_numbers = #tpu.dot_dimension_numbers<[2], [1], [1], [2], [0, 0, 0, 1, 1, 2], [0], [0]>} : vector<2x8x8xf32>, vector<2x8x64xf32>, vector<2x8x64xf32> -> vector<2x8x64xf32>
    "tpu.trace_stop"() : () -> ()
    %32 = vector.shape_cast %31 : vector<2x8x64xf32> to vector<16x64xf32>
    %c0_24 = arith.constant 0 : index
    %c0_25 = arith.constant 0 : index
    %33 = vector.load %arg7[%c0_24, %c0_25] : memref<128x32xf32, #tpu.memory_space<vmem>>, vector<64x32xf32>
    %cst_26 = arith.constant dense<0.000000e+00> : vector<16x32xf32>
    %34 = tpu.matmul %32, %33, %cst_26 {dimension_numbers = #tpu.dot_dimension_numbers<[1], [0], [0], [1], [0, 0, 1, 1], [], []>} : vector<16x64xf32>, vector<64x32xf32>, vector<16x32xf32> -> vector<16x32xf32>
    %35 = arith.addf %0, %34 : vector<16x32xf32>
    %36 = vector.extract_strided_slice %9 {offsets = [0, 0, 64], sizes = [2, 8, 64], strides = [1, 1, 1]} : vector<2x8x128xf32> to vector<2x8x64xf32>
    %37 = vector.extract_strided_slice %10 {offsets = [0, 0, 64], sizes = [2, 8, 64], strides = [1, 1, 1]} : vector<2x8x128xf32> to vector<2x8x64xf32>
    %38 = vector.extract_strided_slice %11 {offsets = [0, 0, 64], sizes = [2, 8, 64], strides = [1, 1, 1]} : vector<2x8x128xf32> to vector<2x8x64xf32>
    "tpu.trace_start"() <{level = 10 : i32, message = "bqd,bkd->bqk"}> : () -> ()
    %cst_27 = arith.constant dense<0.000000e+00> : vector<2x8x8xf32>
    %39 = tpu.matmul %36, %37, %cst_27 {dimension_numbers = #tpu.dot_dimension_numbers<[2], [2], [1], [1], [0, 0, 0, 1, 1, 1], [0], [0]>} : vector<2x8x64xf32>, vector<2x8x64xf32>, vector<2x8x8xf32> -> vector<2x8x8xf32>
    "tpu.trace_stop"() : () -> ()
    %40 = arith.addf %39, %12 : vector<2x8x8xf32>
    %cst_28 = arith.constant dense<0xFF800000> : vector<2x8xf32>
    %41 = vector.multi_reduction <maximumf>, %40, %cst_28 [2] : vector<2x8x8xf32> to vector<2x8xf32>
    %42 = vector.shape_cast %41 : vector<2x8xf32> to vector<2x8x1xf32>
    %43 = vector.broadcast %42 : vector<2x8x1xf32> to vector<2x8x8xf32>
    %44 = arith.subf %40, %43 : vector<2x8x8xf32>
    %45 = math.exp %44 : vector<2x8x8xf32>
    %cst_29 = arith.constant dense<0.000000e+00> : vector<2x8xf32>
    %46 = vector.multi_reduction <add>, %45, %cst_29 [2] : vector<2x8x8xf32> to vector<2x8xf32>
    %47 = vector.shape_cast %46 : vector<2x8xf32> to vector<2x8x1xf32>
    %48 = tpu.reciprocal %47 {approx = true} : vector<2x8x1xf32> -> vector<2x8x1xf32>
    %49 = vector.broadcast %48 : vector<2x8x1xf32> to vector<2x8x8xf32>
    %50 = arith.mulf %45, %49 : vector<2x8x8xf32>
    %c1 = arith.constant 1 : index
    %c0_30 = arith.constant 0 : index
    %c0_31 = arith.constant 0 : index
    %c0_32 = arith.constant 0 : index
    %51 = vector.load %arg9[%c1, %c0_30, %c0_31, %c0_32] : memref<2x2x8x8xf32, #tpu.memory_space<vmem>>, vector<1x2x8x8xf32>
    %52 = vector.shape_cast %51 : vector<1x2x8x8xf32> to vector<2x8x8xf32>
    %53 = vector.shape_cast %50 : vector<2x8x8xf32> to vector<1x2x8x8xf32>
    tpu.vector_store %arg9[%c1, %c0_30, %c0_31, %c0_32], %53 {strides = array<i32>} : memref<2x2x8x8xf32, #tpu.memory_space<vmem>>, vector<1x2x8x8xf32>,
    "tpu.trace_start"() <{level = 10 : i32, message = "bqk,bkd->bqd"}> : () -> ()
    %cst_33 = arith.constant dense<0.000000e+00> : vector<2x8x64xf32>
    %54 = tpu.matmul %50, %38, %cst_33 {dimension_numbers = #tpu.dot_dimension_numbers<[2], [1], [1], [2], [0, 0, 0, 1, 1, 2], [0], [0]>} : vector<2x8x8xf32>, vector<2x8x64xf32>, vector<2x8x64xf32> -> vector<2x8x64xf32>
    "tpu.trace_stop"() : () -> ()
    %55 = vector.shape_cast %54 : vector<2x8x64xf32> to vector<16x64xf32>
    %c64 = arith.constant 64 : index
    %c0_34 = arith.constant 0 : index
    %56 = vector.load %arg7[%c64, %c0_34] : memref<128x32xf32, #tpu.memory_space<vmem>>, vector<64x32xf32>
    %cst_35 = arith.constant dense<0.000000e+00> : vector<16x32xf32>
    %57 = tpu.matmul %55, %56, %cst_35 {dimension_numbers = #tpu.dot_dimension_numbers<[1], [0], [0], [1], [0, 0, 1, 1], [], []>} : vector<16x64xf32>, vector<64x32xf32>, vector<16x32xf32> -> vector<16x32xf32>
    %58 = arith.addf %35, %57 : vector<16x32xf32>
    %cst_36 = arith.constant dense<0.000000e+00> : vector<16xf32>
    %59 = vector.multi_reduction <add>, %58, %cst_36 [1] : vector<16x32xf32> to vector<16xf32>
    %60 = vector.shape_cast %59 : vector<16xf32> to vector<16x1xf32>
    %cst_37 = arith.constant 3.200000e+01 : f32
    %61 = vector.broadcast %cst_37 : f32 to vector<16x1xf32>
    %62 = arith.divf %60, %61 : vector<16x1xf32>
    %63 = vector.broadcast %62 : vector<16x1xf32> to vector<16x32xf32>
    %64 = arith.subf %58, %63 : vector<16x32xf32>
    %65 = arith.mulf %64, %64 : vector<16x32xf32>
    %cst_38 = arith.constant dense<0.000000e+00> : vector<16xf32>
    %66 = vector.multi_reduction <add>, %65, %cst_38 [1] : vector<16x32xf32> to vector<16xf32>
    %67 = vector.shape_cast %66 : vector<16xf32> to vector<16x1xf32>
    %cst_39 = arith.constant 3.200000e+01 : f32
    %68 = vector.broadcast %cst_39 : f32 to vector<16x1xf32>
    %69 = arith.divf %67, %68 : vector<16x1xf32>
    %70 = vector.broadcast %62 : vector<16x1xf32> to vector<16x32xf32>
    %71 = arith.subf %58, %70 : vector<16x32xf32>
    %cst_40 = arith.constant 9.99999974E-6 : f32
    %72 = vector.broadcast %cst_40 : f32 to vector<16x1xf32>
    %73 = arith.addf %69, %72 : vector<16x1xf32>
    %74 = math.rsqrt %73 : vector<16x1xf32>
    %75 = vector.broadcast %74 : vector<16x1xf32> to vector<16x32xf32>
    %76 = arith.mulf %71, %75 : vector<16x32xf32>
    %c0_41 = arith.constant 0 : index
    %c0_42 = arith.constant 0 : index
    %77 = vector.load %arg8[%c0_41, %c0_42] : memref<16x32xf32, #tpu.memory_space<vmem>>, vector<16x32xf32>
    tpu.vector_store %arg8[%c0_41, %c0_42], %76 {strides = array<i32>} : memref<16x32xf32, #tpu.memory_space<vmem>>, vector<16x32xf32>,
    return
  }
}

</mosaic_0001>

<llo_original>
// kernel: tpu_custom_call.1
$region0: #{tpu_custom_call.1}
  #allocation0 [shape = 'u32[]', space=smem, size = 0x4, offset = 0x4, fixed_abs, tag = 'smem constant byte address 0x4 - core index']
  #allocation1 [shape = 'u32[144,128]{1,0:T(1,128)}', space=vmem, size = 0x12000, scoped, tag = 'internal scratch']
  %s0 = inlined_call_operand.vmem [shape: f32[16,32], index: 0, kind: input, shape index: {}]
  %s1 = inlined_call_operand.vmem [shape: f32[16,32], index: 1, kind: input, shape index: {}]
  %s2 = inlined_call_operand.vmem [shape: f32[16,32], index: 2, kind: input, shape index: {}]
  %s3 = inlined_call_operand.vmem [shape: f32[2,8,8], index: 3, kind: input, shape index: {}]
  %s4 = inlined_call_operand.vmem [shape: f32[32,128], index: 4, kind: input, shape index: {}]
  %s5 = inlined_call_operand.vmem [shape: f32[32,128], index: 5, kind: input, shape index: {}]
  %s6 = inlined_call_operand.vmem [shape: f32[32,128], index: 6, kind: input, shape index: {}]
  %s7 = inlined_call_operand.vmem [shape: f32[128,32], index: 7, kind: input, shape index: {}]
  %s8 = inlined_call_operand.hbm [shape: f32[16,32], index: 8, kind: output, shape index: {0}]
  %s9 = inlined_call_operand.hbm [shape: f32[2,2,8,8], index: 9, kind: output, shape index: {1}]
  %10 = xla_tuple %s8, %s9
  %s11 = sld [smem:[#allocation0]]
  $region50: #{tpu_custom_call.1} parent=0
    _
  %s13 = ssub.s32 1, %s11
  %s14 = scalar_select 0, %s13, %s11
  $region1: #{tpu_custom_call.1} parent=0
    #allocation2 [shape = 'u8[8192]{0}', space=vmem, size = 0x2000, scoped, tag = 'output window, operand 0, single buffered']
    #allocation3 [shape = 's32[1]{0}', space=sflag, size = 0x4, scoped, tag = 'scoped memory for tpu_custom_call.1']
    #allocation4 [shape = 'u8[16384]{0}', space=vmem, size = 0x4000, scoped, tag = 'output window, operand 1, single buffered']
    #allocation5 [shape = 's32[1]{0}', space=sflag, size = 0x4, scoped, tag = 'scoped memory for tpu_custom_call.1']
    %15 = vsyncpa [#allocation3], 0
    %16 = vsyncpa [#allocation5], 0
    // Predicated region
    $region2: #{tpu_custom_call.1} parent=1 // pred_check
      _
    $region3: #{tpu_custom_call.1} parent=1 // pred_check_branch
      %18 = sbr.rel (0) target = $region5
    $region4: #{tpu_custom_call.1} parent=1 // pred_region
      _
    $region5: #{tpu_custom_call.1} parent=1 // pred_fallthru
      _
    // Predicated region
    $region6: #{tpu_custom_call.1} parent=1 // pred_check
      _
    $region7: #{tpu_custom_call.1} parent=1 // pred_check_branch
      %20 = sbr.rel (0) target = $region9
    $region8: #{tpu_custom_call.1} parent=1 // pred_region
      _
    $region9: #{tpu_custom_call.1} parent=1 // pred_fallthru
      _
    // Predicated region
    $region10: #{tpu_custom_call.1} parent=1 // pred_check
      _
    $region11: #{tpu_custom_call.1} parent=1 // pred_check_branch
      %22 = sbr.rel (0) target = $region13
    $region12: #{tpu_custom_call.1} parent=1 // pred_region
      _
    $region13: #{tpu_custom_call.1} parent=1 // pred_fallthru
      _
    // Predicated region
    $region14: #{tpu_custom_call.1} parent=1 // pred_check
      _
    $region15: #{tpu_custom_call.1} parent=1 // pred_check_branch
      %24 = sbr.rel (0) target = $region17
    $region16: #{tpu_custom_call.1} parent=1 // pred_region
      _
    $region17: #{tpu_custom_call.1} parent=1 // pred_fallthru
      _
    // Predicated region
    $region18: #{tpu_custom_call.1} parent=1 // pred_check
      _
    $region19: #{tpu_custom_call.1} parent=1 // pred_check_branch
      %26 = sbr.rel (0) target = $region21
    $region20: #{tpu_custom_call.1} parent=1 // pred_region
      _
    $region21: #{tpu_custom_call.1} parent=1 // pred_fallthru
      _
    // Predicated region
    $region22: #{tpu_custom_call.1} parent=1 // pred_check
      _
    $region23: #{tpu_custom_call.1} parent=1 // pred_check_branch
      %28 = sbr.rel (0) target = $region25
    $region24: #{tpu_custom_call.1} parent=1 // pred_region
      _
    $region25: #{tpu_custom_call.1} parent=1 // pred_fallthru
      _
    // Predicated region
    $region26: #{tpu_custom_call.1} parent=1 // pred_check
      _
    $region27: #{tpu_custom_call.1} parent=1 // pred_check_branch
      %30 = sbr.rel (0) target = $region29
    $region28: #{tpu_custom_call.1} parent=1 // pred_region
      _
    $region29: #{tpu_custom_call.1} parent=1 // pred_fallthru
      _
    // Predicated region
    $region30: #{tpu_custom_call.1} parent=1 // pred_check
      _
    $region31: #{tpu_custom_call.1} parent=1 // pred_check_branch
      %32 = sbr.rel (0) target = $region33
    $region32: #{tpu_custom_call.1} parent=1 // pred_region
      _
    $region33: #{tpu_custom_call.1} parent=1 // pred_fallthru
      _
    %v33 = vld [vmem:[%s0] sm:$0xff]
    %v34 = vld [vmem:[%s0 + $0x8] sm:$0xff]
    %v35 = vld [vmem:[%s4] sm:$0xff]
    %v36 = vld [vmem:[%s4 + $0x8] sm:$0xff]
    %v37 = vld [vmem:[%s4 + $0x10] sm:$0xff]
    %v38 = vld [vmem:[%s4 + $0x18] sm:$0xff]
    %vm39 = vcmask 261120
    %v41 = vsel %vm39, %v33, 0
    %v44 = vsel %vm39, %v34, 0
    %46 = vmatprep.subr.mxu0 0.0
    %47 = vmatpush1.msra.mxu0 0.0
    %48 = vmatprep.subr.mxu0 0.0
    %49 = vmatpush1.msra.mxu0 0.0
    %50 = vmatprep.subr.mxu0 0.0
    %51 = vmatpush1.msra.mxu0 0.0
    %52 = vmatprep.subr.mxu0 0.0
    %53 = vmatpush1.msra.mxu0 0.0
    %54 = vmatprep.subr.mxu0 0.0
    %55 = vmatpush1.msra.mxu0 0.0
    %56 = vmatprep.subr.mxu0 0.0
    %57 = vmatpush1.msra.mxu0 0.0
    %58 = vmatprep.subr.mxu0 0.0
    %59 = vmatpush1.msra.mxu0 0.0
    %60 = vmatprep.subr.mxu0 0.0
    %61 = vmatpush1.msra.mxu0 0.0
    %62 = vmatprep.subr.mxu0 0.0
    %63 = vmatpush1.msra.mxu0 0.0
    %64 = vmatprep.subr.mxu0 0.0
    %65 = vmatpush1.msra.mxu0 0.0
    %66 = vmatprep.subr.mxu0 0.0
    %67 = vmatpush1.msra.mxu0 0.0
    %68 = vmatprep.subr.mxu0 0.0
    %69 = vmatpush1.msra.mxu0 0.0
    %70 = vmatprep.subr.mxu0 0.0
    %71 = vmatpush1.msra.mxu0 %v38
    %72 = vmatprep.subr.mxu0 0.0
    %73 = vmatpush1.msra.mxu0 %v37
    %74 = vmatprep.subr.mxu0 0.0
    %75 = vmatpush1.msra.mxu0 %v36
    %76 = vmatprep.subr.mxu0 0.0
    %77 = vmatpush1.msra.mxu0 %v35
    %78 = vmatprep.subr.mxu0 0.0
    %79 = vmatpush2.msra.mxu0 0.0
    %80 = vmatprep.subr.mxu0 0.0
    %81 = vmatpush2.msra.mxu0 0.0
    %82 = vmatprep.subr.mxu0 0.0
    %83 = vmatpush2.msra.mxu0 0.0
    %84 = vmatprep.subr.mxu0 0.0
    %85 = vmatpush2.msra.mxu0 0.0
    %86 = vmatprep.subr.mxu0 0.0
    %87 = vmatpush2.msra.mxu0 0.0
    %88 = vmatprep.subr.mxu0 0.0
    %89 = vmatpush2.msra.mxu0 0.0
    %90 = vmatprep.subr.mxu0 0.0
    %91 = vmatpush2.msra.mxu0 0.0
    %92 = vmatprep.subr.mxu0 0.0
    %93 = vmatpush2.msra.mxu0 0.0
    %94 = vmatprep.subr.mxu0 0.0
    %95 = vmatpush2.msra.mxu0 0.0
    %96 = vmatprep.subr.mxu0 0.0
    %97 = vmatpush2.msra.mxu0 0.0
    %98 = vmatprep.subr.mxu0 0.0
    %99 = vmatpush2.msra.mxu0 0.0
    %100 = vmatprep.subr.mxu0 0.0
    %101 = vmatpush2.msra.mxu0 0.0
    %102 = vmatprep.subr.mxu0 0.0
    %103 = vmatpush2.msra.mxu0 0.0
    %104 = vmatprep.subr.mxu0 0.0
    %105 = vmatpush2.msra.mxu0 0.0
    %106 = vmatprep.subr.mxu0 0.0
    %107 = vmatpush2.msra.mxu0 0.0
    %108 = vmatprep.subr.mxu0 0.0
    %109 = vmatpush2.msra.mxu0 0.0
    %110 = vmatprep.mubr.f32.mxu0 0.0
    %111 = vmatmul.mubr.f32.gmra.mxu0 %v41
    %v112 = vpop.f32.mrf.mxu0
    %v113 = vadd.f32 0.0, %v112
    %v114 = vpop.f32.mrf.mxu0
    %115 = vmatprep.mubr.f32.mxu0 0.0
    %116 = vmatmul.mubr.f32.gmra.mxu0 %v44
    %v117 = vpop.f32.mrf.mxu0
    %v118 = vadd.f32 0.0, %v117
    %v119 = vpop.f32.mrf.mxu0
    %120 = vdwg.mxu0
    %v121 = vld [vmem:[%s1] sm:$0xff]
    %v122 = vld [vmem:[%s1 + $0x8] sm:$0xff]
    %v123 = vld [vmem:[%s5] sm:$0xff]
    %v124 = vld [vmem:[%s5 + $0x8] sm:$0xff]
    %v125 = vld [vmem:[%s5 + $0x10] sm:$0xff]
    %v126 = vld [vmem:[%s5 + $0x18] sm:$0xff]
    %v128 = vsel %vm39, %v121, 0
    %v131 = vsel %vm39, %v122, 0
    %133 = vmatprep.subr.mxu0 0.0
    %134 = vmatpush1.msra.mxu0 0.0
    %135 = vmatprep.subr.mxu0 0.0
    %136 = vmatpush1.msra.mxu0 0.0
    %137 = vmatprep.subr.mxu0 0.0
    %138 = vmatpush1.msra.mxu0 0.0
    %139 = vmatprep.subr.mxu0 0.0
    %140 = vmatpush1.msra.mxu0 0.0
    %141 = vmatprep.subr.mxu0 0.0
    %142 = vmatpush1.msra.mxu0 0.0
    %143 = vmatprep.subr.mxu0 0.0
    %144 = vmatpush1.msra.mxu0 0.0
    %145 = vmatprep.subr.mxu0 0.0
    %146 = vmatpush1.msra.mxu0 0.0
    %147 = vmatprep.subr.mxu0 0.0
    %148 = vmatpush1.msra.mxu0 0.0
    %149 = vmatprep.subr.mxu0 0.0
    %150 = vmatpush1.msra.mxu0 0.0
    %151 = vmatprep.subr.mxu0 0.0
    %152 = vmatpush1.msra.mxu0 0.0
    %153 = vmatprep.subr.mxu0 0.0
    %154 = vmatpush1.msra.mxu0 0.0
    %155 = vmatprep.subr.mxu0 0.0
    %156 = vmatpush1.msra.mxu0 0.0
    %157 = vmatprep.subr.mxu0 0.0
    %158 = vmatpush1.msra.mxu0 %v126
    %159 = vmatprep.subr.mxu0 0.0
    %160 = vmatpush1.msra.mxu0 %v125
    %161 = vmatprep.subr.mxu0 0.0
    %162 = vmatpush1.msra.mxu0 %v124
    %163 = vmatprep.subr.mxu0 0.0
    %164 = vmatpush1.msra.mxu0 %v123
    %165 = vmatprep.subr.mxu0 0.0
    %166 = vmatpush2.msra.mxu0 0.0
    %167 = vmatprep.subr.mxu0 0.0
    %168 = vmatpush2.msra.mxu0 0.0
    %169 = vmatprep.subr.mxu0 0.0
    %170 = vmatpush2.msra.mxu0 0.0
    %171 = vmatprep.subr.mxu0 0.0
    %172 = vmatpush2.msra.mxu0 0.0
    %173 = vmatprep.subr.mxu0 0.0
    %174 = vmatpush2.msra.mxu0 0.0
    %175 = vmatprep.subr.mxu0 0.0
    %176 = vmatpush2.msra.mxu0 0.0
    %177 = vmatprep.subr.mxu0 0.0
    %178 = vmatpush2.msra.mxu0 0.0
    %179 = vmatprep.subr.mxu0 0.0
    %180 = vmatpush2.msra.mxu0 0.0
    %181 = vmatprep.subr.mxu0 0.0
    %182 = vmatpush2.msra.mxu0 0.0
    %183 = vmatprep.subr.mxu0 0.0
    %184 = vmatpush2.msra.mxu0 0.0
    %185 = vmatprep.subr.mxu0 0.0
    %186 = vmatpush2.msra.mxu0 0.0
    %187 = vmatprep.subr.mxu0 0.0
    %188 = vmatpush2.msra.mxu0 0.0
    %189 = vmatprep.subr.mxu0 0.0
    %190 = vmatpush2.msra.mxu0 0.0
    %191 = vmatprep.subr.mxu0 0.0
    %192 = vmatpush2.msra.mxu0 0.0
    %193 = vmatprep.subr.mxu0 0.0
    %194 = vmatpush2.msra.mxu0 0.0
    %195 = vmatprep.subr.mxu0 0.0
    %196 = vmatpush2.msra.mxu0 0.0
    %197 = vmatprep.mubr.f32.mxu0 0.0
    %198 = vmatmul.mubr.f32.gmra.mxu0 %v128
    %v199 = vpop.f32.mrf.mxu0
    %v200 = vadd.f32 0.0, %v199
    %v201 = vpop.f32.mrf.mxu0
    %202 = vmatprep.mubr.f32.mxu0 0.0
    %203 = vmatmul.mubr.f32.gmra.mxu0 %v131
    %v204 = vpop.f32.mrf.mxu0
    %v205 = vadd.f32 0.0, %v204
    %v206 = vpop.f32.mrf.mxu0
    %207 = vdwg.mxu0
    %v208 = vld [vmem:[%s2] sm:$0xff]
    %v209 = vld [vmem:[%s2 + $0x8] sm:$0xff]
    %v210 = vld [vmem:[%s6] sm:$0xff]
    %v211 = vld [vmem:[%s6 + $0x8] sm:$0xff]
    %v212 = vld [vmem:[%s6 + $0x10] sm:$0xff]
    %v213 = vld [vmem:[%s6 + $0x18] sm:$0xff]
    %v215 = vsel %vm39, %v208, 0
    %v218 = vsel %vm39, %v209, 0
    %220 = vmatprep.subr.mxu0 0.0
    %221 = vmatpush1.msra.mxu0 0.0
    %222 = vmatprep.subr.mxu0 0.0
    %223 = vmatpush1.msra.mxu0 0.0
    %224 = vmatprep.subr.mxu0 0.0
    %225 = vmatpush1.msra.mxu0 0.0
    %226 = vmatprep.subr.mxu0 0.0
    %227 = vmatpush1.msra.mxu0 0.0
    %228 = vmatprep.subr.mxu0 0.0
    %229 = vmatpush1.msra.mxu0 0.0
    %230 = vmatprep.subr.mxu0 0.0
    %231 = vmatpush1.msra.mxu0 0.0
    %232 = vmatprep.subr.mxu0 0.0
    %233 = vmatpush1.msra.mxu0 0.0
    %234 = vmatprep.subr.mxu0 0.0
    %235 = vmatpush1.msra.mxu0 0.0
    %236 = vmatprep.subr.mxu0 0.0
    %237 = vmatpush1.msra.mxu0 0.0
    %238 = vmatprep.subr.mxu0 0.0
    %239 = vmatpush1.msra.mxu0 0.0
    %240 = vmatprep.subr.mxu0 0.0
    %241 = vmatpush1.msra.mxu0 0.0
    %242 = vmatprep.subr.mxu0 0.0
    %243 = vmatpush1.msra.mxu0 0.0
    %244 = vmatprep.subr.mxu0 0.0
    %245 = vmatpush1.msra.mxu0 %v213
    %246 = vmatprep.subr.mxu0 0.0
    %247 = vmatpush1.msra.mxu0 %v212
    %248 = vmatprep.subr.mxu0 0.0
    %249 = vmatpush1.msra.mxu0 %v211
    %250 = vmatprep.subr.mxu0 0.0
    %251 = vmatpush1.msra.mxu0 %v210
    %252 = vmatprep.subr.mxu0 0.0
    %253 = vmatpush2.msra.mxu0 0.0
    %254 = vmatprep.subr.mxu0 0.0
    %255 = vmatpush2.msra.mxu0 0.0
    %256 = vmatprep.subr.mxu0 0.0
    %257 = vmatpush2.msra.mxu0 0.0
    %258 = vmatprep.subr.mxu0 0.0
    %259 = vmatpush2.msra.mxu0 0.0
    %260 = vmatprep.subr.mxu0 0.0
    %261 = vmatpush2.msra.mxu0 0.0
    %262 = vmatprep.subr.mxu0 0.0
    %263 = vmatpush2.msra.mxu0 0.0
    %264 = vmatprep.subr.mxu0 0.0
    %265 = vmatpush2.msra.mxu0 0.0
    %266 = vmatprep.subr.mxu0 0.0
    %267 = vmatpush2.msra.mxu0 0.0
    %268 = vmatprep.subr.mxu0 0.0
    %269 = vmatpush2.msra.mxu0 0.0
    %270 = vmatprep.subr.mxu0 0.0
    %271 = vmatpush2.msra.mxu0 0.0
    %272 = vmatprep.subr.mxu0 0.0
    %273 = vmatpush2.msra.mxu0 0.0
    %274 = vmatprep.subr.mxu0 0.0
    %275 = vmatpush2.msra.mxu0 0.0
    %276 = vmatprep.subr.mxu0 0.0
    %277 = vmatpush2.msra.mxu0 0.0
    %278 = vmatprep.subr.mxu0 0.0
    %279 = vmatpush2.msra.mxu0 0.0
    %280 = vmatprep.subr.mxu0 0.0
    %281 = vmatpush2.msra.mxu0 0.0
    %282 = vmatprep.subr.mxu0 0.0
    %283 = vmatpush2.msra.mxu0 0.0
    %284 = vmatprep.mubr.f32.mxu0 0.0
    %285 = vmatmul.mubr.f32.gmra.mxu0 %v215
    %v286 = vpop.f32.mrf.mxu0
    %v287 = vadd.f32 0.0, %v286
    %v288 = vpop.f32.mrf.mxu0
    %289 = vmatprep.mubr.f32.mxu0 0.0
    %290 = vmatmul.mubr.f32.gmra.mxu0 %v218
    %v291 = vpop.f32.mrf.mxu0
    %v292 = vadd.f32 0.0, %v291
    %v293 = vpop.f32.mrf.mxu0
    %294 = vdwg.mxu0
    %v295 = vld [vmem:[%s3] sm:$0xff]
    %v296 = vld [vmem:[%s3 + $0x8] sm:$0xff]
    %vm297 = vcmask 523264
    %v299 = vsel %vm297, %v113, 0
    %v302 = vsel %vm297, %v200, 0
    %304 = vmatprep.subr.mxu0 0.0
    %305 = vmatpush1.xpose.msra.mxu0 0.0
    %306 = vmatprep.subr.mxu0 0.0
    %307 = vmatpush1.xpose.msra.mxu0 0.0
    %308 = vmatprep.subr.mxu0 0.0
    %309 = vmatpush1.xpose.msra.mxu0 0.0
    %310 = vmatprep.subr.mxu0 0.0
    %311 = vmatpush1.xpose.msra.mxu0 0.0
    %312 = vmatprep.subr.mxu0 0.0
    %313 = vmatpush1.xpose.msra.mxu0 0.0
    %314 = vmatprep.subr.mxu0 0.0
    %315 = vmatpush1.xpose.msra.mxu0 0.0
    %316 = vmatprep.subr.mxu0 0.0
    %317 = vmatpush1.xpose.msra.mxu0 0.0
    %318 = vmatprep.subr.mxu0 0.0
    %319 = vmatpush1.xpose.msra.mxu0 0.0
    %320 = vmatprep.subr.mxu0 0.0
    %321 = vmatpush1.xpose.msra.mxu0 0.0
    %322 = vmatprep.subr.mxu0 0.0
    %323 = vmatpush1.xpose.msra.mxu0 0.0
    %324 = vmatprep.subr.mxu0 0.0
    %325 = vmatpush1.xpose.msra.mxu0 0.0
    %326 = vmatprep.subr.mxu0 0.0
    %327 = vmatpush1.xpose.msra.mxu0 0.0
    %328 = vmatprep.subr.mxu0 0.0
    %329 = vmatpush1.xpose.msra.mxu0 0.0
    %330 = vmatprep.subr.mxu0 0.0
    %331 = vmatpush1.xpose.msra.mxu0 0.0
    %332 = vmatprep.subr.mxu0 0.0
    %333 = vmatpush1.xpose.msra.mxu0 0.0
    %334 = vmatprep.subr.mxu0 0.0
    %335 = vmatpush1.xpose.msra.mxu0 %v302
    %336 = vmatprep.subr.mxu0 0.0
    %337 = vmatpush2.xpose.msra.mxu0 0.0
    %338 = vmatprep.subr.mxu0 0.0
    %339 = vmatpush2.xpose.msra.mxu0 0.0
    %340 = vmatprep.subr.mxu0 0.0
    %341 = vmatpush2.xpose.msra.mxu0 0.0
    %342 = vmatprep.subr.mxu0 0.0
    %343 = vmatpush2.xpose.msra.mxu0 0.0
    %344 = vmatprep.subr.mxu0 0.0
    %345 = vmatpush2.xpose.msra.mxu0 0.0
    %346 = vmatprep.subr.mxu0 0.0
    %347 = vmatpush2.xpose.msra.mxu0 0.0
    %348 = vmatprep.subr.mxu0 0.0
    %349 = vmatpush2.xpose.msra.mxu0 0.0
    %350 = vmatprep.subr.mxu0 0.0
    %351 = vmatpush2.xpose.msra.mxu0 0.0
    %352 = vmatprep.subr.mxu0 0.0
    %353 = vmatpush2.xpose.msra.mxu0 0.0
    %354 = vmatprep.subr.mxu0 0.0
    %355 = vmatpush2.xpose.msra.mxu0 0.0
    %356 = vmatprep.subr.mxu0 0.0
    %357 = vmatpush2.xpose.msra.mxu0 0.0
    %358 = vmatprep.subr.mxu0 0.0
    %359 = vmatpush2.xpose.msra.mxu0 0.0
    %360 = vmatprep.subr.mxu0 0.0
    %361 = vmatpush2.xpose.msra.mxu0 0.0
    %362 = vmatprep.subr.mxu0 0.0
    %363 = vmatpush2.xpose.msra.mxu0 0.0
    %364 = vmatprep.subr.mxu0 0.0
    %365 = vmatpush2.xpose.msra.mxu0 0.0
    %366 = vmatprep.subr.mxu0 0.0
    %367 = vmatpush2.xpose.msra.mxu0 0.0
    %368 = vmatprep.mubr.f32.mxu0 0.0
    %369 = vmatmul.mubr.f32.gmra.mxu0 %v299
    %v370 = vpop.f32.mrf.mxu0
    %v371 = vadd.f32 %v295, %v370
    %v372 = vpop.f32.mrf.mxu0
    %373 = vdwg.mxu0
    %v375 = vsel %vm297, %v118, 0
    %v378 = vsel %vm297, %v205, 0
    %380 = vmatprep.subr.mxu0 0.0
    %381 = vmatpush1.xpose.msra.mxu0 0.0
    %382 = vmatprep.subr.mxu0 0.0
    %383 = vmatpush1.xpose.msra.mxu0 0.0
    %384 = vmatprep.subr.mxu0 0.0
    %385 = vmatpush1.xpose.msra.mxu0 0.0
    %386 = vmatprep.subr.mxu0 0.0
    %387 = vmatpush1.xpose.msra.mxu0 0.0
    %388 = vmatprep.subr.mxu0 0.0
    %389 = vmatpush1.xpose.msra.mxu0 0.0
    %390 = vmatprep.subr.mxu0 0.0
    %391 = vmatpush1.xpose.msra.mxu0 0.0
    %392 = vmatprep.subr.mxu0 0.0
    %393 = vmatpush1.xpose.msra.mxu0 0.0
    %394 = vmatprep.subr.mxu0 0.0
    %395 = vmatpush1.xpose.msra.mxu0 0.0
    %396 = vmatprep.subr.mxu0 0.0
    %397 = vmatpush1.xpose.msra.mxu0 0.0
    %398 = vmatprep.subr.mxu0 0.0
    %399 = vmatpush1.xpose.msra.mxu0 0.0
    %400 = vmatprep.subr.mxu0 0.0
    %401 = vmatpush1.xpose.msra.mxu0 0.0
    %402 = vmatprep.subr.mxu0 0.0
    %403 = vmatpush1.xpose.msra.mxu0 0.0
    %404 = vmatprep.subr.mxu0 0.0
    %405 = vmatpush1.xpose.msra.mxu0 0.0
    %406 = vmatprep.subr.mxu0 0.0
    %407 = vmatpush1.xpose.msra.mxu0 0.0
    %408 = vmatprep.subr.mxu0 0.0
    %409 = vmatpush1.xpose.msra.mxu0 0.0
    %410 = vmatprep.subr.mxu0 0.0
    %411 = vmatpush1.xpose.msra.mxu0 %v378
    %412 = vmatprep.subr.mxu0 0.0
    %413 = vmatpush2.xpose.msra.mxu0 0.0
    %414 = vmatprep.subr.mxu0 0.0
    %415 = vmatpush2.xpose.msra.mxu0 0.0
    %416 = vmatprep.subr.mxu0 0.0
    %417 = vmatpush2.xpose.msra.mxu0 0.0
    %418 = vmatprep.subr.mxu0 0.0
    %419 = vmatpush2.xpose.msra.mxu0 0.0
    %420 = vmatprep.subr.mxu0 0.0
    %421 = vmatpush2.xpose.msra.mxu0 0.0
    %422 = vmatprep.subr.mxu0 0.0
    %423 = vmatpush2.xpose.msra.mxu0 0.0
    %424 = vmatprep.subr.mxu0 0.0
    %425 = vmatpush2.xpose.msra.mxu0 0.0
    %426 = vmatprep.subr.mxu0 0.0
    %427 = vmatpush2.xpose.msra.mxu0 0.0
    %428 = vmatprep.subr.mxu0 0.0
    %429 = vmatpush2.xpose.msra.mxu0 0.0
    %430 = vmatprep.subr.mxu0 0.0
    %431 = vmatpush2.xpose.msra.mxu0 0.0
    %432 = vmatprep.subr.mxu0 0.0
    %433 = vmatpush2.xpose.msra.mxu0 0.0
    %434 = vmatprep.subr.mxu0 0.0
    %435 = vmatpush2.xpose.msra.mxu0 0.0
    %436 = vmatprep.subr.mxu0 0.0
    %437 = vmatpush2.xpose.msra.mxu0 0.0
    %438 = vmatprep.subr.mxu0 0.0
    %439 = vmatpush2.xpose.msra.mxu0 0.0
    %440 = vmatprep.subr.mxu0 0.0
    %441 = vmatpush2.xpose.msra.mxu0 0.0
    %442 = vmatprep.subr.mxu0 0.0
    %443 = vmatpush2.xpose.msra.mxu0 0.0
    %444 = vmatprep.mubr.f32.mxu0 0.0
    %445 = vmatmul.mubr.f32.gmra.mxu0 %v375
    %v446 = vpop.f32.mrf.mxu0
    %v447 = vadd.f32 %v296, %v446
    %v448 = vpop.f32.mrf.mxu0
    %449 = vdwg.mxu0
    %vm450 = vcmask 64512
    %v451 = vsel %vm450, %v371, -inf
    %452 = vmax.xlane.f32.xlu0 %v451
    %v453 = vpop.xlane.xlu0 %452
    %v454 = vsel %vm450, %v447, -inf
    %455 = vmax.xlane.f32.xlu0 %v454
    %v456 = vpop.xlane.xlu0 %455
    %v457 = vsub.f32 %v371, %v453
    %v458 = vsub.f32 %v447, %v456
    %v459 = vmul.f32 %v457, 1.442695
    %v460 = vpow.pop %v459
    %v461 = vmul.f32 %v458, 1.442695
    %v462 = vpow.pop %v461
    %v463 = vsel %vm450, %v460, 0.0
    %464 = vadd.xlane.f32.xlu0 %v463
    %v465 = vpop.xlane.xlu0 %464
    %v466 = vsel %vm450, %v462, 0.0
    %467 = vadd.xlane.f32.xlu0 %v466
    %v468 = vpop.xlane.xlu0 %467
    %v469 = vrcp.pop %v465
    %v470 = vrcp.pop %v468
    %v471 = vmul.f32 %v460, %v469
    %v472 = vmul.f32 %v462, %v470
    %473 = vst.msk [vmem:[#allocation4] sm:$0xff] %vm450, %v471
    %474 = vst.msk [vmem:[#allocation4 + $0x8] sm:$0xff] %vm450, %v472
    %v476 = vsel %vm450, %v471, 0
    %478 = vmatprep.subr.mxu0 0.0
    %479 = vmatpush1.msra.mxu0 0.0
    %480 = vmatprep.subr.mxu0 0.0
    %481 = vmatpush1.msra.mxu0 0.0
    %482 = vmatprep.subr.mxu0 0.0
    %483 = vmatpush1.msra.mxu0 0.0
    %484 = vmatprep.subr.mxu0 0.0
    %485 = vmatpush1.msra.mxu0 0.0
    %486 = vmatprep.subr.mxu0 0.0
    %487 = vmatpush1.msra.mxu0 0.0
    %488 = vmatprep.subr.mxu0 0.0
    %489 = vmatpush1.msra.mxu0 0.0
    %490 = vmatprep.subr.mxu0 0.0
    %491 = vmatpush1.msra.mxu0 0.0
    %492 = vmatprep.subr.mxu0 0.0
    %493 = vmatpush1.msra.mxu0 0.0
    %494 = vmatprep.subr.mxu0 0.0
    %495 = vmatpush1.msra.mxu0 0.0
    %496 = vmatprep.subr.mxu0 0.0
    %497 = vmatpush1.msra.mxu0 0.0
    %498 = vmatprep.subr.mxu0 0.0
    %499 = vmatpush1.msra.mxu0 0.0
    %500 = vmatprep.subr.mxu0 0.0
    %501 = vmatpush1.msra.mxu0 0.0
    %502 = vmatprep.subr.mxu0 0.0
    %503 = vmatpush1.msra.mxu0 0.0
    %504 = vmatprep.subr.mxu0 0.0
    %505 = vmatpush1.msra.mxu0 0.0
    %506 = vmatprep.subr.mxu0 0.0
    %507 = vmatpush1.msra.mxu0 0.0
    %508 = vmatprep.subr.mxu0 0.0
    %509 = vmatpush1.msra.mxu0 %v287
    %510 = vmatprep.subr.mxu0 0.0
    %511 = vmatpush2.msra.mxu0 0.0
    %512 = vmatprep.subr.mxu0 0.0
    %513 = vmatpush2.msra.mxu0 0.0
    %514 = vmatprep.subr.mxu0 0.0
    %515 = vmatpush2.msra.mxu0 0.0
    %516 = vmatprep.subr.mxu0 0.0
    %517 = vmatpush2.msra.mxu0 0.0
    %518 = vmatprep.subr.mxu0 0.0
    %519 = vmatpush2.msra.mxu0 0.0
    %520 = vmatprep.subr.mxu0 0.0
    %521 = vmatpush2.msra.mxu0 0.0
    %522 = vmatprep.subr.mxu0 0.0
    %523 = vmatpush2.msra.mxu0 0.0
    %524 = vmatprep.subr.mxu0 0.0
    %525 = vmatpush2.msra.mxu0 0.0
    %526 = vmatprep.subr.mxu0 0.0
    %527 = vmatpush2.msra.mxu0 0.0
    %528 = vmatprep.subr.mxu0 0.0
    %529 = vmatpush2.msra.mxu0 0.0
    %530 = vmatprep.subr.mxu0 0.0
    %531 = vmatpush2.msra.mxu0 0.0
    %532 = vmatprep.subr.mxu0 0.0
    %533 = vmatpush2.msra.mxu0 0.0
    %534 = vmatprep.subr.mxu0 0.0
    %535 = vmatpush2.msra.mxu0 0.0
    %536 = vmatprep.subr.mxu0 0.0
    %537 = vmatpush2.msra.mxu0 0.0
    %538 = vmatprep.subr.mxu0 0.0
    %539 = vmatpush2.msra.mxu0 0.0
    %540 = vmatprep.subr.mxu0 0.0
    %541 = vmatpush2.msra.mxu0 0.0
    %542 = vmatprep.mubr.f32.mxu0 0.0
    %543 = vmatmul.mubr.f32.gmra.mxu0 %v476
    %v544 = vpop.f32.mrf.mxu0
    %v545 = vadd.f32 0.0, %v544
    %v546 = vpop.f32.mrf.mxu0
    %547 = vdwg.mxu0
    %v549 = vsel %vm450, %v472, 0
    %551 = vmatprep.subr.mxu0 0.0
    %552 = vmatpush1.msra.mxu0 0.0
    %553 = vmatprep.subr.mxu0 0.0
    %554 = vmatpush1.msra.mxu0 0.0
    %555 = vmatprep.subr.mxu0 0.0
    %556 = vmatpush1.msra.mxu0 0.0
    %557 = vmatprep.subr.mxu0 0.0
    %558 = vmatpush1.msra.mxu0 0.0
    %559 = vmatprep.subr.mxu0 0.0
    %560 = vmatpush1.msra.mxu0 0.0
    %561 = vmatprep.subr.mxu0 0.0
    %562 = vmatpush1.msra.mxu0 0.0
    %563 = vmatprep.subr.mxu0 0.0
    %564 = vmatpush1.msra.mxu0 0.0
    %565 = vmatprep.subr.mxu0 0.0
    %566 = vmatpush1.msra.mxu0 0.0
    %567 = vmatprep.subr.mxu0 0.0
    %568 = vmatpush1.msra.mxu0 0.0
    %569 = vmatprep.subr.mxu0 0.0
    %570 = vmatpush1.msra.mxu0 0.0
    %571 = vmatprep.subr.mxu0 0.0
    %572 = vmatpush1.msra.mxu0 0.0
    %573 = vmatprep.subr.mxu0 0.0
    %574 = vmatpush1.msra.mxu0 0.0
    %575 = vmatprep.subr.mxu0 0.0
    %576 = vmatpush1.msra.mxu0 0.0
    %577 = vmatprep.subr.mxu0 0.0
    %578 = vmatpush1.msra.mxu0 0.0
    %579 = vmatprep.subr.mxu0 0.0
    %580 = vmatpush1.msra.mxu0 0.0
    %581 = vmatprep.subr.mxu0 0.0
    %582 = vmatpush1.msra.mxu0 %v292
    %583 = vmatprep.subr.mxu0 0.0
    %584 = vmatpush2.msra.mxu0 0.0
    %585 = vmatprep.subr.mxu0 0.0
    %586 = vmatpush2.msra.mxu0 0.0
    %587 = vmatprep.subr.mxu0 0.0
    %588 = vmatpush2.msra.mxu0 0.0
    %589 = vmatprep.subr.mxu0 0.0
    %590 = vmatpush2.msra.mxu0 0.0
    %591 = vmatprep.subr.mxu0 0.0
    %592 = vmatpush2.msra.mxu0 0.0
    %593 = vmatprep.subr.mxu0 0.0
    %594 = vmatpush2.msra.mxu0 0.0
    %595 = vmatprep.subr.mxu0 0.0
    %596 = vmatpush2.msra.mxu0 0.0
    %597 = vmatprep.subr.mxu0 0.0
    %598 = vmatpush2.msra.mxu0 0.0
    %599 = vmatprep.subr.mxu0 0.0
    %600 = vmatpush2.msra.mxu0 0.0
    %601 = vmatprep.subr.mxu0 0.0
    %602 = vmatpush2.msra.mxu0 0.0
    %603 = vmatprep.subr.mxu0 0.0
    %604 = vmatpush2.msra.mxu0 0.0
    %605 = vmatprep.subr.mxu0 0.0
    %606 = vmatpush2.msra.mxu0 0.0
    %607 = vmatprep.subr.mxu0 0.0
    %608 = vmatpush2.msra.mxu0 0.0
    %609 = vmatprep.subr.mxu0 0.0
    %610 = vmatpush2.msra.mxu0 0.0
    %611 = vmatprep.subr.mxu0 0.0
    %612 = vmatpush2.msra.mxu0 0.0
    %613 = vmatprep.subr.mxu0 0.0
    %614 = vmatpush2.msra.mxu0 0.0
    %615 = vmatprep.mubr.f32.mxu0 0.0
    %616 = vmatmul.mubr.f32.gmra.mxu0 %v549
    %v617 = vpop.f32.mrf.mxu0
    %v618 = vadd.f32 0.0, %v617
    %v619 = vpop.f32.mrf.mxu0
    %620 = vdwg.mxu0
    %v621 = vld [vmem:[%s7] sm:$0xff]
    %v622 = vld [vmem:[%s7 + $0x8] sm:$0xff]
    %v623 = vld [vmem:[%s7 + $0x10] sm:$0xff]
    %v624 = vld [vmem:[%s7 + $0x18] sm:$0xff]
    %v625 = vld [vmem:[%s7 + $0x20] sm:$0xff]
    %v626 = vld [vmem:[%s7 + $0x28] sm:$0xff]
    %v627 = vld [vmem:[%s7 + $0x30] sm:$0xff]
    %v628 = vld [vmem:[%s7 + $0x38] sm:$0xff]
    %v630 = vsel %vm297, %v545, 0
    %v633 = vsel %vm297, %v618, 0
    %635 = vmatprep.subr.mxu0 0.0
    %636 = vmatpush1.msra.mxu0 0.0
    %637 = vmatprep.subr.mxu0 0.0
    %638 = vmatpush1.msra.mxu0 0.0
    %639 = vmatprep.subr.mxu0 0.0
    %640 = vmatpush1.msra.mxu0 0.0
    %641 = vmatprep.subr.mxu0 0.0
    %642 = vmatpush1.msra.mxu0 0.0
    %643 = vmatprep.subr.mxu0 0.0
    %644 = vmatpush1.msra.mxu0 0.0
    %645 = vmatprep.subr.mxu0 0.0
    %646 = vmatpush1.msra.mxu0 0.0
    %647 = vmatprep.subr.mxu0 0.0
    %648 = vmatpush1.msra.mxu0 0.0
    %649 = vmatprep.subr.mxu0 0.0
    %650 = vmatpush1.msra.mxu0 0.0
    %651 = vmatprep.subr.mxu0 0.0
    %652 = vmatpush1.msra.mxu0 %v628
    %653 = vmatprep.subr.mxu0 0.0
    %654 = vmatpush1.msra.mxu0 %v627
    %655 = vmatprep.subr.mxu0 0.0
    %656 = vmatpush1.msra.mxu0 %v626
    %657 = vmatprep.subr.mxu0 0.0
    %658 = vmatpush1.msra.mxu0 %v625
    %659 = vmatprep.subr.mxu0 0.0
    %660 = vmatpush1.msra.mxu0 %v624
    %661 = vmatprep.subr.mxu0 0.0
    %662 = vmatpush1.msra.mxu0 %v623
    %663 = vmatprep.subr.mxu0 0.0
    %664 = vmatpush1.msra.mxu0 %v622
    %665 = vmatprep.subr.mxu0 0.0
    %666 = vmatpush1.msra.mxu0 %v621
    %667 = vmatprep.subr.mxu0 0.0
    %668 = vmatpush2.msra.mxu0 0.0
    %669 = vmatprep.subr.mxu0 0.0
    %670 = vmatpush2.msra.mxu0 0.0
    %671 = vmatprep.subr.mxu0 0.0
    %672 = vmatpush2.msra.mxu0 0.0
    %673 = vmatprep.subr.mxu0 0.0
    %674 = vmatpush2.msra.mxu0 0.0
    %675 = vmatprep.subr.mxu0 0.0
    %676 = vmatpush2.msra.mxu0 0.0
    %677 = vmatprep.subr.mxu0 0.0
    %678 = vmatpush2.msra.mxu0 0.0
    %679 = vmatprep.subr.mxu0 0.0
    %680 = vmatpush2.msra.mxu0 0.0
    %681 = vmatprep.subr.mxu0 0.0
    %682 = vmatpush2.msra.mxu0 0.0
    %683 = vmatprep.subr.mxu0 0.0
    %684 = vmatpush2.msra.mxu0 0.0
    %685 = vmatprep.subr.mxu0 0.0
    %686 = vmatpush2.msra.mxu0 0.0
    %687 = vmatprep.subr.mxu0 0.0
    %688 = vmatpush2.msra.mxu0 0.0
    %689 = vmatprep.subr.mxu0 0.0
    %690 = vmatpush2.msra.mxu0 0.0
    %691 = vmatprep.subr.mxu0 0.0
    %692 = vmatpush2.msra.mxu0 0.0
    %693 = vmatprep.subr.mxu0 0.0
    %694 = vmatpush2.msra.mxu0 0.0
    %695 = vmatprep.subr.mxu0 0.0
    %696 = vmatpush2.msra.mxu0 0.0
    %697 = vmatprep.subr.mxu0 0.0
    %698 = vmatpush2.msra.mxu0 0.0
    %699 = vmatprep.mubr.f32.mxu0 0.0
    %700 = vmatmul.mubr.f32.gmra.mxu0 %v630
    %v701 = vpop.f32.mrf.mxu0
    %v702 = vadd.f32 0.0, %v701
    %v703 = vpop.f32.mrf.mxu0
    %704 = vmatprep.mubr.f32.mxu0 0.0
    %705 = vmatmul.mubr.f32.gmra.mxu0 %v633
    %v706 = vpop.f32.mrf.mxu0
    %v707 = vadd.f32 0.0, %v706
    %v708 = vpop.f32.mrf.mxu0
    %709 = vdwg.mxu0
    %v710 = vadd.f32 %v33, %v702
    %v711 = vadd.f32 %v34, %v707
    %712 = vrot.lane.b32.xlu0 %v113, 64
    %v713 = vpop.permute.xlu0 %712
    %714 = vrot.lane.b32.xlu0 %v200, 64
    %v715 = vpop.permute.xlu0 %714
    %v716 = vsel %vm297, %v713, 0
    %v718 = vsel %vm297, %v715, 0
    %720 = vmatprep.subr.mxu0 0.0
    %721 = vmatpush1.xpose.msra.mxu0 0.0
    %722 = vmatprep.subr.mxu0 0.0
    %723 = vmatpush1.xpose.msra.mxu0 0.0
    %724 = vmatprep.subr.mxu0 0.0
    %725 = vmatpush1.xpose.msra.mxu0 0.0
    %726 = vmatprep.subr.mxu0 0.0
    %727 = vmatpush1.xpose.msra.mxu0 0.0
    %728 = vmatprep.subr.mxu0 0.0
    %729 = vmatpush1.xpose.msra.mxu0 0.0
    %730 = vmatprep.subr.mxu0 0.0
    %731 = vmatpush1.xpose.msra.mxu0 0.0
    %732 = vmatprep.subr.mxu0 0.0
    %733 = vmatpush1.xpose.msra.mxu0 0.0
    %734 = vmatprep.subr.mxu0 0.0
    %735 = vmatpush1.xpose.msra.mxu0 0.0
    %736 = vmatprep.subr.mxu0 0.0
    %737 = vmatpush1.xpose.msra.mxu0 0.0
    %738 = vmatprep.subr.mxu0 0.0
    %739 = vmatpush1.xpose.msra.mxu0 0.0
    %740 = vmatprep.subr.mxu0 0.0
    %741 = vmatpush1.xpose.msra.mxu0 0.0
    %742 = vmatprep.subr.mxu0 0.0
    %743 = vmatpush1.xpose.msra.mxu0 0.0
    %744 = vmatprep.subr.mxu0 0.0
    %745 = vmatpush1.xpose.msra.mxu0 0.0
    %746 = vmatprep.subr.mxu0 0.0
    %747 = vmatpush1.xpose.msra.mxu0 0.0
    %748 = vmatprep.subr.mxu0 0.0
    %749 = vmatpush1.xpose.msra.mxu0 0.0
    %750 = vmatprep.subr.mxu0 0.0
    %751 = vmatpush1.xpose.msra.mxu0 %v718
    %752 = vmatprep.subr.mxu0 0.0
    %753 = vmatpush2.xpose.msra.mxu0 0.0
    %754 = vmatprep.subr.mxu0 0.0
    %755 = vmatpush2.xpose.msra.mxu0 0.0
    %756 = vmatprep.subr.mxu0 0.0
    %757 = vmatpush2.xpose.msra.mxu0 0.0
    %758 = vmatprep.subr.mxu0 0.0
    %759 = vmatpush2.xpose.msra.mxu0 0.0
    %760 = vmatprep.subr.mxu0 0.0
    %761 = vmatpush2.xpose.msra.mxu0 0.0
    %762 = vmatprep.subr.mxu0 0.0
    %763 = vmatpush2.xpose.msra.mxu0 0.0
    %764 = vmatprep.subr.mxu0 0.0
    %765 = vmatpush2.xpose.msra.mxu0 0.0
    %766 = vmatprep.subr.mxu0 0.0
    %767 = vmatpush2.xpose.msra.mxu0 0.0
    %768 = vmatprep.subr.mxu0 0.0
    %769 = vmatpush2.xpose.msra.mxu0 0.0
    %770 = vmatprep.subr.mxu0 0.0
    %771 = vmatpush2.xpose.msra.mxu0 0.0
    %772 = vmatprep.subr.mxu0 0.0
    %773 = vmatpush2.xpose.msra.mxu0 0.0
    %774 = vmatprep.subr.mxu0 0.0
    %775 = vmatpush2.xpose.msra.mxu0 0.0
    %776 = vmatprep.subr.mxu0 0.0
    %777 = vmatpush2.xpose.msra.mxu0 0.0
    %778 = vmatprep.subr.mxu0 0.0
    %779 = vmatpush2.xpose.msra.mxu0 0.0
    %780 = vmatprep.subr.mxu0 0.0
    %781 = vmatpush2.xpose.msra.mxu0 0.0
    %782 = vmatprep.subr.mxu0 0.0
    %783 = vmatpush2.xpose.msra.mxu0 0.0
    %784 = vmatprep.mubr.f32.mxu0 0.0
    %785 = vmatmul.mubr.f32.gmra.mxu0 %v716
    %v786 = vpop.f32.mrf.mxu0
    %v787 = vadd.f32 %v295, %v786
    %v788 = vpop.f32.mrf.mxu0
    %789 = vdwg.mxu0
    %790 = vrot.lane.b32.xlu0 %v118, 64
    %v791 = vpop.permute.xlu0 %790
    %792 = vrot.lane.b32.xlu0 %v205, 64
    %v793 = vpop.permute.xlu0 %792
    %v794 = vsel %vm297, %v791, 0
    %v796 = vsel %vm297, %v793, 0
    %798 = vmatprep.subr.mxu0 0.0
    %799 = vmatpush1.xpose.msra.mxu0 0.0
    %800 = vmatprep.subr.mxu0 0.0
    %801 = vmatpush1.xpose.msra.mxu0 0.0
    %802 = vmatprep.subr.mxu0 0.0
    %803 = vmatpush1.xpose.msra.mxu0 0.0
    %804 = vmatprep.subr.mxu0 0.0
    %805 = vmatpush1.xpose.msra.mxu0 0.0
    %806 = vmatprep.subr.mxu0 0.0
    %807 = vmatpush1.xpose.msra.mxu0 0.0
    %808 = vmatprep.subr.mxu0 0.0
    %809 = vmatpush1.xpose.msra.mxu0 0.0
    %810 = vmatprep.subr.mxu0 0.0
    %811 = vmatpush1.xpose.msra.mxu0 0.0
    %812 = vmatprep.subr.mxu0 0.0
    %813 = vmatpush1.xpose.msra.mxu0 0.0
    %814 = vmatprep.subr.mxu0 0.0
    %815 = vmatpush1.xpose.msra.mxu0 0.0
    %816 = vmatprep.subr.mxu0 0.0
    %817 = vmatpush1.xpose.msra.mxu0 0.0
    %818 = vmatprep.subr.mxu0 0.0
    %819 = vmatpush1.xpose.msra.mxu0 0.0
    %820 = vmatprep.subr.mxu0 0.0
    %821 = vmatpush1.xpose.msra.mxu0 0.0
    %822 = vmatprep.subr.mxu0 0.0
    %823 = vmatpush1.xpose.msra.mxu0 0.0
    %824 = vmatprep.subr.mxu0 0.0
    %825 = vmatpush1.xpose.msra.mxu0 0.0
    %826 = vmatprep.subr.mxu0 0.0
    %827 = vmatpush1.xpose.msra.mxu0 0.0
    %828 = vmatprep.subr.mxu0 0.0
    %829 = vmatpush1.xpose.msra.mxu0 %v796
    %830 = vmatprep.subr.mxu0 0.0
    %831 = vmatpush2.xpose.msra.mxu0 0.0
    %832 = vmatprep.subr.mxu0 0.0
    %833 = vmatpush2.xpose.msra.mxu0 0.0
    %834 = vmatprep.subr.mxu0 0.0
    %835 = vmatpush2.xpose.msra.mxu0 0.0
    %836 = vmatprep.subr.mxu0 0.0
    %837 = vmatpush2.xpose.msra.mxu0 0.0
    %838 = vmatprep.subr.mxu0 0.0
    %839 = vmatpush2.xpose.msra.mxu0 0.0
    %840 = vmatprep.subr.mxu0 0.0
    %841 = vmatpush2.xpose.msra.mxu0 0.0
    %842 = vmatprep.subr.mxu0 0.0
    %843 = vmatpush2.xpose.msra.mxu0 0.0
    %844 = vmatprep.subr.mxu0 0.0
    %845 = vmatpush2.xpose.msra.mxu0 0.0
    %846 = vmatprep.subr.mxu0 0.0
    %847 = vmatpush2.xpose.msra.mxu0 0.0
    %848 = vmatprep.subr.mxu0 0.0
    %849 = vmatpush2.xpose.msra.mxu0 0.0
    %850 = vmatprep.subr.mxu0 0.0
    %851 = vmatpush2.xpose.msra.mxu0 0.0
    %852 = vmatprep.subr.mxu0 0.0
    %853 = vmatpush2.xpose.msra.mxu0 0.0
    %854 = vmatprep.subr.mxu0 0.0
    %855 = vmatpush2.xpose.msra.mxu0 0.0
    %856 = vmatprep.subr.mxu0 0.0
    %857 = vmatpush2.xpose.msra.mxu0 0.0
    %858 = vmatprep.subr.mxu0 0.0
    %859 = vmatpush2.xpose.msra.mxu0 0.0
    %860 = vmatprep.subr.mxu0 0.0
    %861 = vmatpush2.xpose.msra.mxu0 0.0
    %862 = vmatprep.mubr.f32.mxu0 0.0
    %863 = vmatmul.mubr.f32.gmra.mxu0 %v794
    %v864 = vpop.f32.mrf.mxu0
    %v865 = vadd.f32 %v296, %v864
    %v866 = vpop.f32.mrf.mxu0
    %867 = vdwg.mxu0
    %v868 = vsel %vm450, %v787, -inf
    %869 = vmax.xlane.f32.xlu0 %v868
    %v870 = vpop.xlane.xlu0 %869
    %v871 = vsel %vm450, %v865, -inf
    %872 = vmax.xlane.f32.xlu0 %v871
    %v873 = vpop.xlane.xlu0 %872
    %v874 = vsub.f32 %v787, %v870
    %v875 = vsub.f32 %v865, %v873
    %v876 = vmul.f32 %v874, 1.442695
    %v877 = vpow.pop %v876
    %v878 = vmul.f32 %v875, 1.442695
    %v879 = vpow.pop %v878
    %v880 = vsel %vm450, %v877, 0.0
    %881 = vadd.xlane.f32.xlu0 %v880
    %v882 = vpop.xlane.xlu0 %881
    %v883 = vsel %vm450, %v879, 0.0
    %884 = vadd.xlane.f32.xlu0 %v883
    %v885 = vpop.xlane.xlu0 %884
    %v886 = vrcp.pop %v882
    %v887 = vrcp.pop %v885
    %v888 = vmul.f32 %v877, %v886
    %v889 = vmul.f32 %v879, %v887
    %s890 = scalar_lea.vmem [#allocation4], 16
    %891 = vst.msk [vmem:[%s890] sm:$0xff] %vm450, %v888
    %892 = vst.msk [vmem:[%s890 + $0x8] sm:$0xff] %vm450, %v889
    %894 = vrot.lane.b32.xlu0 %v287, 64
    %v895 = vpop.permute.xlu0 %894
    %v898 = vsel %vm450, %v888, 0
    %900 = vmatprep.subr.mxu0 0.0
    %901 = vmatpush1.msra.mxu0 0.0
    %902 = vmatprep.subr.mxu0 0.0
    %903 = vmatpush1.msra.mxu0 0.0
    %904 = vmatprep.subr.mxu0 0.0
    %905 = vmatpush1.msra.mxu0 0.0
    %906 = vmatprep.subr.mxu0 0.0
    %907 = vmatpush1.msra.mxu0 0.0
    %908 = vmatprep.subr.mxu0 0.0
    %909 = vmatpush1.msra.mxu0 0.0
    %910 = vmatprep.subr.mxu0 0.0
    %911 = vmatpush1.msra.mxu0 0.0
    %912 = vmatprep.subr.mxu0 0.0
    %913 = vmatpush1.msra.mxu0 0.0
    %914 = vmatprep.subr.mxu0 0.0
    %915 = vmatpush1.msra.mxu0 0.0
    %916 = vmatprep.subr.mxu0 0.0
    %917 = vmatpush1.msra.mxu0 0.0
    %918 = vmatprep.subr.mxu0 0.0
    %919 = vmatpush1.msra.mxu0 0.0
    %920 = vmatprep.subr.mxu0 0.0
    %921 = vmatpush1.msra.mxu0 0.0
    %922 = vmatprep.subr.mxu0 0.0
    %923 = vmatpush1.msra.mxu0 0.0
    %924 = vmatprep.subr.mxu0 0.0
    %925 = vmatpush1.msra.mxu0 0.0
    %926 = vmatprep.subr.mxu0 0.0
    %927 = vmatpush1.msra.mxu0 0.0
    %928 = vmatprep.subr.mxu0 0.0
    %929 = vmatpush1.msra.mxu0 0.0
    %930 = vmatprep.subr.mxu0 0.0
    %931 = vmatpush1.msra.mxu0 %v895
    %932 = vmatprep.subr.mxu0 0.0
    %933 = vmatpush2.msra.mxu0 0.0
    %934 = vmatprep.subr.mxu0 0.0
    %935 = vmatpush2.msra.mxu0 0.0
    %936 = vmatprep.subr.mxu0 0.0
    %937 = vmatpush2.msra.mxu0 0.0
    %938 = vmatprep.subr.mxu0 0.0
    %939 = vmatpush2.msra.mxu0 0.0
    %940 = vmatprep.subr.mxu0 0.0
    %941 = vmatpush2.msra.mxu0 0.0
    %942 = vmatprep.subr.mxu0 0.0
    %943 = vmatpush2.msra.mxu0 0.0
    %944 = vmatprep.subr.mxu0 0.0
    %945 = vmatpush2.msra.mxu0 0.0
    %946 = vmatprep.subr.mxu0 0.0
    %947 = vmatpush2.msra.mxu0 0.0
    %948 = vmatprep.subr.mxu0 0.0
    %949 = vmatpush2.msra.mxu0 0.0
    %950 = vmatprep.subr.mxu0 0.0
    %951 = vmatpush2.msra.mxu0 0.0
    %952 = vmatprep.subr.mxu0 0.0
    %953 = vmatpush2.msra.mxu0 0.0
    %954 = vmatprep.subr.mxu0 0.0
    %955 = vmatpush2.msra.mxu0 0.0
    %956 = vmatprep.subr.mxu0 0.0
    %957 = vmatpush2.msra.mxu0 0.0
    %958 = vmatprep.subr.mxu0 0.0
    %959 = vmatpush2.msra.mxu0 0.0
    %960 = vmatprep.subr.mxu0 0.0
    %961 = vmatpush2.msra.mxu0 0.0
    %962 = vmatprep.subr.mxu0 0.0
    %963 = vmatpush2.msra.mxu0 0.0
    %964 = vmatprep.mubr.f32.mxu0 0.0
    %965 = vmatmul.mubr.f32.gmra.mxu0 %v898
    %v966 = vpop.f32.mrf.mxu0
    %v967 = vadd.f32 0.0, %v966
    %v968 = vpop.f32.mrf.mxu0
    %969 = vdwg.mxu0
    %971 = vrot.lane.b32.xlu0 %v292, 64
    %v972 = vpop.permute.xlu0 %971
    %v975 = vsel %vm450, %v889, 0
    %977 = vmatprep.subr.mxu0 0.0
    %978 = vmatpush1.msra.mxu0 0.0
    %979 = vmatprep.subr.mxu0 0.0
    %980 = vmatpush1.msra.mxu0 0.0
    %981 = vmatprep.subr.mxu0 0.0
    %982 = vmatpush1.msra.mxu0 0.0
    %983 = vmatprep.subr.mxu0 0.0
    %984 = vmatpush1.msra.mxu0 0.0
    %985 = vmatprep.subr.mxu0 0.0
    %986 = vmatpush1.msra.mxu0 0.0
    %987 = vmatprep.subr.mxu0 0.0
    %988 = vmatpush1.msra.mxu0 0.0
    %989 = vmatprep.subr.mxu0 0.0
    %990 = vmatpush1.msra.mxu0 0.0
    %991 = vmatprep.subr.mxu0 0.0
    %992 = vmatpush1.msra.mxu0 0.0
    %993 = vmatprep.subr.mxu0 0.0
    %994 = vmatpush1.msra.mxu0 0.0
    %995 = vmatprep.subr.mxu0 0.0
    %996 = vmatpush1.msra.mxu0 0.0
    %997 = vmatprep.subr.mxu0 0.0
    %998 = vmatpush1.msra.mxu0 0.0
    %999 = vmatprep.subr.mxu0 0.0
    %1000 = vmatpush1.msra.mxu0 0.0
    %1001 = vmatprep.subr.mxu0 0.0
    %1002 = vmatpush1.msra.mxu0 0.0
    %1003 = vmatprep.subr.mxu0 0.0
    %1004 = vmatpush1.msra.mxu0 0.0
    %1005 = vmatprep.subr.mxu0 0.0
    %1006 = vmatpush1.msra.mxu0 0.0
    %1007 = vmatprep.subr.mxu0 0.0
    %1008 = vmatpush1.msra.mxu0 %v972
    %1009 = vmatprep.subr.mxu0 0.0
    %1010 = vmatpush2.msra.mxu0 0.0
    %1011 = vmatprep.subr.mxu0 0.0
    %1012 = vmatpush2.msra.mxu0 0.0
    %1013 = vmatprep.subr.mxu0 0.0
    %1014 = vmatpush2.msra.mxu0 0.0
    %1015 = vmatprep.subr.mxu0 0.0
    %1016 = vmatpush2.msra.mxu0 0.0
    %1017 = vmatprep.subr.mxu0 0.0
    %1018 = vmatpush2.msra.mxu0 0.0
    %1019 = vmatprep.subr.mxu0 0.0
    %1020 = vmatpush2.msra.mxu0 0.0
    %1021 = vmatprep.subr.mxu0 0.0
    %1022 = vmatpush2.msra.mxu0 0.0
    %1023 = vmatprep.subr.mxu0 0.0
    %1024 = vmatpush2.msra.mxu0 0.0
    %1025 = vmatprep.subr.mxu0 0.0
    %1026 = vmatpush2.msra.mxu0 0.0
    %1027 = vmatprep.subr.mxu0 0.0
    %1028 = vmatpush2.msra.mxu0 0.0
    %1029 = vmatprep.subr.mxu0 0.0
    %1030 = vmatpush2.msra.mxu0 0.0
    %1031 = vmatprep.subr.mxu0 0.0
    %1032 = vmatpush2.msra.mxu0 0.0
    %1033 = vmatprep.subr.mxu0 0.0
    %1034 = vmatpush2.msra.mxu0 0.0
    %1035 = vmatprep.subr.mxu0 0.0
    %1036 = vmatpush2.msra.mxu0 0.0
    %1037 = vmatprep.subr.mxu0 0.0
    %1038 = vmatpush2.msra.mxu0 0.0
    %1039 = vmatprep.subr.mxu0 0.0
    %1040 = vmatpush2.msra.mxu0 0.0
    %1041 = vmatprep.mubr.f32.mxu0 0.0
    %1042 = vmatmul.mubr.f32.gmra.mxu0 %v975
    %v1043 = vpop.f32.mrf.mxu0
    %v1044 = vadd.f32 0.0, %v1043
    %v1045 = vpop.f32.mrf.mxu0
    %1046 = vdwg.mxu0
    %v1047 = vld [vmem:[%s7 + $0x40] sm:$0xff]
    %v1048 = vld [vmem:[%s7 + $0x48] sm:$0xff]
    %v1049 = vld [vmem:[%s7 + $0x50] sm:$0xff]
    %v1050 = vld [vmem:[%s7 + $0x58] sm:$0xff]
    %v1051 = vld [vmem:[%s7 + $0x60] sm:$0xff]
    %v1052 = vld [vmem:[%s7 + $0x68] sm:$0xff]
    %v1053 = vld [vmem:[%s7 + $0x70] sm:$0xff]
    %v1054 = vld [vmem:[%s7 + $0x78] sm:$0xff]
    %v1056 = vsel %vm297, %v967, 0
    %v1059 = vsel %vm297, %v1044, 0
    %1061 = vmatprep.subr.mxu0 0.0
    %1062 = vmatpush1.msra.mxu0 0.0
    %1063 = vmatprep.subr.mxu0 0.0
    %1064 = vmatpush1.msra.mxu0 0.0
    %1065 = vmatprep.subr.mxu0 0.0
    %1066 = vmatpush1.msra.mxu0 0.0
    %1067 = vmatprep.subr.mxu0 0.0
    %1068 = vmatpush1.msra.mxu0 0.0
    %1069 = vmatprep.subr.mxu0 0.0
    %1070 = vmatpush1.msra.mxu0 0.0
    %1071 = vmatprep.subr.mxu0 0.0
    %1072 = vmatpush1.msra.mxu0 0.0
    %1073 = vmatprep.subr.mxu0 0.0
    %1074 = vmatpush1.msra.mxu0 0.0
    %1075 = vmatprep.subr.mxu0 0.0
    %1076 = vmatpush1.msra.mxu0 0.0
    %1077 = vmatprep.subr.mxu0 0.0
    %1078 = vmatpush1.msra.mxu0 %v1054
    %1079 = vmatprep.subr.mxu0 0.0
    %1080 = vmatpush1.msra.mxu0 %v1053
    %1081 = vmatprep.subr.mxu0 0.0
    %1082 = vmatpush1.msra.mxu0 %v1052
    %1083 = vmatprep.subr.mxu0 0.0
    %1084 = vmatpush1.msra.mxu0 %v1051
    %1085 = vmatprep.subr.mxu0 0.0
    %1086 = vmatpush1.msra.mxu0 %v1050
    %1087 = vmatprep.subr.mxu0 0.0
    %1088 = vmatpush1.msra.mxu0 %v1049
    %1089 = vmatprep.subr.mxu0 0.0
    %1090 = vmatpush1.msra.mxu0 %v1048
    %1091 = vmatprep.subr.mxu0 0.0
    %1092 = vmatpush1.msra.mxu0 %v1047
    %1093 = vmatprep.subr.mxu0 0.0
    %1094 = vmatpush2.msra.mxu0 0.0
    %1095 = vmatprep.subr.mxu0 0.0
    %1096 = vmatpush2.msra.mxu0 0.0
    %1097 = vmatprep.subr.mxu0 0.0
    %1098 = vmatpush2.msra.mxu0 0.0
    %1099 = vmatprep.subr.mxu0 0.0
    %1100 = vmatpush2.msra.mxu0 0.0
    %1101 = vmatprep.subr.mxu0 0.0
    %1102 = vmatpush2.msra.mxu0 0.0
    %1103 = vmatprep.subr.mxu0 0.0
    %1104 = vmatpush2.msra.mxu0 0.0
    %1105 = vmatprep.subr.mxu0 0.0
    %1106 = vmatpush2.msra.mxu0 0.0
    %1107 = vmatprep.subr.mxu0 0.0
    %1108 = vmatpush2.msra.mxu0 0.0
    %1109 = vmatprep.subr.mxu0 0.0
    %1110 = vmatpush2.msra.mxu0 0.0
    %1111 = vmatprep.subr.mxu0 0.0
    %1112 = vmatpush2.msra.mxu0 0.0
    %1113 = vmatprep.subr.mxu0 0.0
    %1114 = vmatpush2.msra.mxu0 0.0
    %1115 = vmatprep.subr.mxu0 0.0
    %1116 = vmatpush2.msra.mxu0 0.0
    %1117 = vmatprep.subr.mxu0 0.0
    %1118 = vmatpush2.msra.mxu0 0.0
    %1119 = vmatprep.subr.mxu0 0.0
    %1120 = vmatpush2.msra.mxu0 0.0
    %1121 = vmatprep.subr.mxu0 0.0
    %1122 = vmatpush2.msra.mxu0 0.0
    %1123 = vmatprep.subr.mxu0 0.0
    %1124 = vmatpush2.msra.mxu0 0.0
    %1125 = vmatprep.mubr.f32.mxu0 0.0
    %1126 = vmatmul.mubr.f32.gmra.mxu0 %v1056
    %v1127 = vpop.f32.mrf.mxu0
    %v1128 = vadd.f32 0.0, %v1127
    %v1129 = vpop.f32.mrf.mxu0
    %1130 = vmatprep.mubr.f32.mxu0 0.0
    %1131 = vmatmul.mubr.f32.gmra.mxu0 %v1059
    %v1132 = vpop.f32.mrf.mxu0
    %v1133 = vadd.f32 0.0, %v1132
    %v1134 = vpop.f32.mrf.mxu0
    %1135 = vdwg.mxu0
    %v1136 = vadd.f32 %v710, %v1128
    %v1137 = vadd.f32 %v711, %v1133
    %v1138 = vsel %vm39, %v1136, 0.0
    %1139 = vadd.xlane.f32.xlu0 %v1138
    %v1140 = vpop.xlane.xlu0 %1139
    %v1141 = vsel %vm39, %v1137, 0.0
    %1142 = vadd.xlane.f32.xlu0 %v1141
    %v1143 = vpop.xlane.xlu0 %1142
    %v1144 = vrcp.pop 32.0
    %v1145 = vmul.f32 %v1140, %v1144
    %v1146 = vmul.f32 %v1143, %v1144
    %v1147 = vsub.f32 %v1136, %v1145
    %v1148 = vsub.f32 %v1137, %v1146
    %v1149 = vmul.f32 %v1147, %v1147
    %v1150 = vmul.f32 %v1148, %v1148
    %v1151 = vsel %vm39, %v1149, 0.0
    %1152 = vadd.xlane.f32.xlu0 %v1151
    %v1153 = vpop.xlane.xlu0 %1152
    %v1154 = vsel %vm39, %v1150, 0.0
    %1155 = vadd.xlane.f32.xlu0 %v1154
    %v1156 = vpop.xlane.xlu0 %1155
    %v1157 = vmul.f32 %v1153, %v1144
    %v1158 = vmul.f32 %v1156, %v1144
    %v1159 = vadd.f32 %v1157, 1e-05
    %v1160 = vadd.f32 %v1158, 1e-05
    %v1161 = vrsqrt.pop %v1159
    %v1162 = vrsqrt.pop %v1160
    %v1163 = vmul.f32 %v1147, %v1161
    %v1164 = vmul.f32 %v1148, %v1162
    %1165 = vst.msk [vmem:[#allocation2] sm:$0xff] %vm39, %v1163
    %1166 = vst.msk [vmem:[#allocation2 + $0x8] sm:$0xff] %vm39, %v1164
    // Predicated region
    $region34: #{tpu_custom_call.1} parent=1 // pred_check
      _
    $region35: #{tpu_custom_call.1} parent=1 // pred_check_branch
      %1168 = sbr.rel (0) target = $region37
    $region36: #{tpu_custom_call.1} parent=1 // pred_region
      %s1170 = ssub.s32 256, 256
      %1171 = vsyncadd [#allocation3], %s1170
      %s1172 = sshll.u32 [#allocation2], 4
      %s1173 = int_to_ptr.vmem [resolvable:$true] %s1172
      %1178 = dma.vmem_to_hbm [thread:$0]  %s1173, 256, %s8, [#allocation3], 128, 128, 8
    $region37: #{tpu_custom_call.1} parent=1 // pred_fallthru
      _
    // Predicated region
    $region38: #{tpu_custom_call.1} parent=1 // pred_check
      _
    $region39: #{tpu_custom_call.1} parent=1 // pred_check_branch
      %1180 = sbr.rel (0) target = $region41
    $region40: #{tpu_custom_call.1} parent=1 // pred_region
      %s1182 = ssub.s32 512, 512
      %1183 = vsyncadd [#allocation5], %s1182
      %s1184 = sshll.u32 [#allocation4], 4
      %s1185 = int_to_ptr.vmem [resolvable:$true] %s1184
      %1190 = dma.vmem_to_hbm [thread:$0]  %s1185, 512, %s9, [#allocation5], 128, 128, 8
    $region41: #{tpu_custom_call.1} parent=1 // pred_fallthru
      _
    // Predicated region
    $region42: #{tpu_custom_call.1} parent=1 // pred_check
      _
    $region43: #{tpu_custom_call.1} parent=1 // pred_check_branch
      %1192 = sbr.rel (0) target = $region45
    $region44: #{tpu_custom_call.1} parent=1 // pred_region
      %1193 = dma.done [#allocation3], 256
    $region45: #{tpu_custom_call.1} parent=1 // pred_fallthru
      _
    // Predicated region
    $region46: #{tpu_custom_call.1} parent=1 // pred_check
      _
    $region47: #{tpu_custom_call.1} parent=1 // pred_check_branch
      %1195 = sbr.rel (0) target = $region49
    $region48: #{tpu_custom_call.1} parent=1 // pred_region
      %1196 = dma.done [#allocation5], 512
    $region49: #{tpu_custom_call.1} parent=1 // pred_fallthru
      _
    %1197 = vsyncpa [#allocation3], 1
    %1198 = vsyncpa [#allocation5], 1

</llo_original>
